<compile_context>
chip_gen: v7x
topology: tpu7x:2x2x1
jax: 0.10.0
libtpu: 0.0.40
codegen_flags: <defaults>
</compile_context>

<pallas_src>
import functools

import jax
import jax.numpy as jnp
from jax import lax
from jax.experimental import pallas as pl
from jax.experimental.pallas import tpu as pltpu

# Finite "minus infinity": avoids any inf-inf -> NaN edge cases on all paths.
_NEG_INF = -1e30


def _round_up(n: int, m: int) -> int:
    return ((n + m - 1) // m) * m


# ---------------------------------------------------------------------------
# Fused single-invocation kernel (small sequences): QKV + softmax + PV.
# ---------------------------------------------------------------------------
def _fused_attn_kernel(x_ref, w_ref, o_ref, *, d_pad):
    # QKV projection with f32 accumulation on the MXU.
    qkv = jnp.dot(x_ref[...], w_ref[...], preferred_element_type=jnp.float32)
    # Lane-aligned (multiple-of-128) slices of the fused projection.
    q = qkv[:, 0 * d_pad:1 * d_pad]   # 1/sqrt(d_out) already folded into Wq
    k = qkv[:, 1 * d_pad:2 * d_pad]
    v = qkv[:, 2 * d_pad:3 * d_pad]
    # scores = q @ k^T without materializing a transposed K.
    s = lax.dot_general(q, k, dimension_numbers=(((1,), (1,)), ((), ())),
                        preferred_element_type=jnp.float32)
    m = jnp.max(s, axis=-1, keepdims=True)
    p = jnp.exp(s - m)
    l = jnp.sum(p, axis=-1, keepdims=True)
    ctx = jnp.dot(p, v, preferred_element_type=jnp.float32)
    o_ref[...] = (ctx / l).astype(o_ref.dtype)   # exact normalization


# ---------------------------------------------------------------------------
# Kernel 1 (large path): fused QKV projection, one lane-dense output.
# ---------------------------------------------------------------------------
def _qkv_proj_kernel(x_ref, w_ref, qkv_ref):
    qkv_ref[...] = jnp.dot(
        x_ref[...], w_ref[...],
        preferred_element_type=jnp.float32).astype(qkv_ref.dtype)


# ---------------------------------------------------------------------------
# Kernel 2 (large path): flash attention (online softmax, no (S,S) in HBM).
# ---------------------------------------------------------------------------
def _flash_attn_kernel(q_ref, k_ref, v_ref, o_ref, m_sc, l_sc, acc_sc, *,
                       seq_len, tkv, masked):
    ki = pl.program_id(1)

    @pl.when(ki == 0)
    def _init():
        m_sc[...] = jnp.full_like(m_sc, _NEG_INF)
        l_sc[...] = jnp.zeros_like(l_sc)
        acc_sc[...] = jnp.zeros_like(acc_sc)

    q = q_ref[...]        # (tq,  d_pad)  -- scale folded into Wq
    k = k_ref[...]        # (tkv, d_pad)
    v = v_ref[...]        # (tkv, d_pad)

    # scores = q @ k^T (contract last dims; K never transposed in VMEM).
    s = lax.dot_general(q, k, dimension_numbers=(((1,), (1,)), ((), ())),
                        preferred_element_type=jnp.float32)
    if masked:
        # Mask key columns that belong to sequence padding.
        col = ki * tkv + lax.broadcasted_iota(jnp.int32, s.shape, 1)
        s = jnp.where(col < seq_len, s, _NEG_INF)

    m_prev = m_sc[...]
    m_new = jnp.maximum(m_prev, jnp.max(s, axis=-1, keepdims=True))
    alpha = jnp.exp(m_prev - m_new)
    p = jnp.exp(s - m_new)

    l_sc[...] = alpha * l_sc[...] + jnp.sum(p, axis=-1, keepdims=True)
    acc_sc[...] = alpha * acc_sc[...] + jnp.dot(
        p.astype(v.dtype), v, preferred_element_type=jnp.float32)
    m_sc[...] = m_new

    @pl.when(ki == pl.num_programs(1) - 1)
    def _finalize():
        # Exact normalization (approx reciprocal caused accuracy problems).
        o_ref[...] = (acc_sc[...] / l_sc[...]).astype(o_ref.dtype)


# ---------------------------------------------------------------------------
# Wrapper
# ---------------------------------------------------------------------------
def self_attention(x, w_query, w_key, w_value):
    """x: (seq_len, d_in); weights: (d_in, d_out) -> (seq_len, d_out)."""
    seq_len, d_in = x.shape
    d_out = w_query.shape[1]
    d_pad = _round_up(d_out, 128)            # lane-dense head dimension
    scale = 1.0 / (d_out ** 0.5)             # static Python float

    # Fused, pre-scaled, lane-padded QKV weight: (d_in, 3*d_pad).
    w_qkv = jnp.zeros((d_in, 3 * d_pad), jnp.float32)
    w_qkv = w_qkv.at[:, 0 * d_pad:0 * d_pad + d_out].set(
        w_query.astype(jnp.float32) * scale)
    w_qkv = w_qkv.at[:, 1 * d_pad:1 * d_pad + d_out].set(w_key.astype(jnp.float32))
    w_qkv = w_qkv.at[:, 2 * d_pad:2 * d_pad + d_out].set(w_value.astype(jnp.float32))
    w_qkv = w_qkv.astype(x.dtype)

    itemsize = jnp.dtype(x.dtype).itemsize

    # ---- small problems: one fused kernel, no grid, no HBM round trip -----
    fused_bytes = (4 * (2 * seq_len * seq_len + seq_len * 4 * d_pad)
                   + itemsize * (seq_len * d_in + d_in * 3 * d_pad))
    if seq_len <= 512 and fused_bytes <= 10 * 1024 * 1024:
        out = pl.pallas_call(
            functools.partial(_fused_attn_kernel, d_pad=d_pad),
            out_shape=jax.ShapeDtypeStruct((seq_len, d_pad), x.dtype),
            grid=(1,),
            in_specs=[pl.BlockSpec((seq_len, d_in), lambda i: (0, 0)),
                      pl.BlockSpec((d_in, 3 * d_pad), lambda i: (0, 0))],
            out_specs=pl.BlockSpec((seq_len, d_pad), lambda i: (0, 0)),
        )(x, w_qkv)
        return out[:, :d_out]

    # ---- large problems: QKV projection + flash attention -----------------
    # Bigger tiles than before (perf feedback): fewer grid steps and less
    # K/V re-streaming from HBM; scaled down only when d_pad grows.
    if d_pad <= 128:
        tq, tkv = 512, 1024
    elif d_pad <= 256:
        tq, tkv = 512, 512
    else:
        tq, tkv = 256, 512

    # Pad the sequence to a tile multiple (tkv is a multiple of tq), so any
    # seq_len works without degenerate tiles; padded keys are masked in-kernel.
    seq_pad = _round_up(seq_len, tkv)
    if seq_pad != seq_len:
        x = jnp.pad(x, ((0, seq_pad - seq_len), (0, 0)))

    # Projection row tile: as large as a ~12 MiB double-buffered budget allows.
    t_rows = tkv
    while t_rows > 256 and 2 * t_rows * (d_in + 3 * d_pad) * itemsize > 12 * 1024 * 1024:
        t_rows //= 2

    qkv = pl.pallas_call(
        _qkv_proj_kernel,
        out_shape=jax.ShapeDtypeStruct((seq_pad, 3 * d_pad), x.dtype),
        grid_spec=pltpu.PrefetchScalarGridSpec(
            num_scalar_prefetch=0,
            grid=(seq_pad // t_rows,),
            in_specs=[pl.BlockSpec((t_rows, d_in), lambda i: (i, 0)),
                      pl.BlockSpec((d_in, 3 * d_pad), lambda i: (0, 0))],
            out_specs=pl.BlockSpec((t_rows, 3 * d_pad), lambda i: (i, 0)),
        ),
        compiler_params=pltpu.CompilerParams(
            dimension_semantics=("parallel",),
            vmem_limit_bytes=32 * 1024 * 1024),
    )(x, w_qkv)

    masked = seq_pad != seq_len
    out = pl.pallas_call(
        functools.partial(_flash_attn_kernel,
                          seq_len=seq_len, tkv=tkv, masked=masked),
        out_shape=jax.ShapeDtypeStruct((seq_pad, d_pad), x.dtype),
        grid_spec=pltpu.PrefetchScalarGridSpec(
            num_scalar_prefetch=0,
            grid=(seq_pad // tq, seq_pad // tkv),
            # Q/K/V are column blocks of the single lane-dense qkv array.
            in_specs=[
                pl.BlockSpec((tq, d_pad), lambda qi, ki: (qi, 0)),    # Q cols
                pl.BlockSpec((tkv, d_pad), lambda qi, ki: (ki, 1)),   # K cols
                pl.BlockSpec((tkv, d_pad), lambda qi, ki: (ki, 2)),   # V cols
            ],
            # Output block constant along kv -> resident accumulator, written
            # once at finalize.
            out_specs=pl.BlockSpec((tq, d_pad), lambda qi, ki: (qi, 0)),
            scratch_shapes=[
                pltpu.VMEM((tq, 1), jnp.float32),      # running max m
                pltpu.VMEM((tq, 1), jnp.float32),      # running sum l
                pltpu.VMEM((tq, d_pad), jnp.float32),  # unnormalized acc
            ],
        ),
        compiler_params=pltpu.CompilerParams(
            dimension_semantics=("parallel", "arbitrary"),
            vmem_limit_bytes=32 * 1024 * 1024),
    )(qkv, qkv, qkv)

    return out[:seq_len, :d_out]


def self_attention_ref(x, w_query, w_key, w_value):
    """Pure-JAX reference mirroring the PyTorch forward."""
    keys = x @ w_key
    queries = x @ w_query
    values = x @ w_value
    attn_scores = queries @ keys.T
    attn_weights = jax.nn.softmax(attn_scores / keys.shape[-1] ** 0.5, axis=-1)
    return attn_weights @ values


if __name__ == "__main__":
    key = jax.random.PRNGKey(0)
    k_x, k_q, k_k, k_v, k_x2, k_w2 = jax.random.split(key, 6)

    # --- demo shape implied by the module (unbatched: seq_len, d_in) -------
    seq_len, d_in, d_out = 8, 32, 16
    x = jax.random.normal(k_x, (seq_len, d_in), dtype=jnp.float32)
    w_query = jax.random.uniform(k_q, (d_in, d_out), dtype=jnp.float32)  # torch.rand
    w_key = jax.random.uniform(k_k, (d_in, d_out), dtype=jnp.float32)
    w_value = jax.random.uniform(k_v, (d_in, d_out), dtype=jnp.float32)

    out = jax.block_until_ready(self_attention(x, w_query, w_key, w_value))
    ref = self_attention_ref(x, w_query, w_key, w_value)
    assert out.shape == (seq_len, d_out)
    assert jnp.allclose(out, ref, atol=2e-3, rtol=2e-3), "fused path mismatch"

    # --- larger shape exercising the tiled flash path (padding + masking) --
    seq2, din2, dout2 = 1500, 96, 64
    x2 = 0.5 * jax.random.normal(k_x2, (seq2, din2), dtype=jnp.float32)
    kq2, kk2, kv2 = jax.random.split(k_w2, 3)
    wq2 = jax.random.uniform(kq2, (din2, dout2), jnp.float32, -0.5, 0.5)
    wk2 = jax.random.uniform(kk2, (din2, dout2), jnp.float32, -0.5, 0.5)
    wv2 = jax.random.uniform(kv2, (din2, dout2), jnp.float32, -0.5, 0.5)

    out2 = jax.block_until_ready(self_attention(x2, wq2, wk2, wv2))
    ref2 = self_attention_ref(x2, wq2, wk2, wv2)
    assert out2.shape == (seq2, dout2)
    assert jnp.allclose(out2, ref2, atol=2e-3, rtol=2e-3), "flash path mismatch"

    print("KERNEL_OK")
</pallas_src>

<mosaic_0001>
module attributes {stable_mosaic.version = 11 : i64} {
  func.func @_fused_attn_kernel(%arg0: i32, %arg1: memref<8x32xf32, #tpu.memory_space<vmem>>, %arg2: memref<32x384xf32, #tpu.memory_space<vmem>>, %arg3: memref<8x128xf32, #tpu.memory_space<vmem>>) attributes {dimension_semantics = [#tpu.dimension_semantics<arbitrary>], iteration_bounds = array<i64: 1>, scalar_prefetch = 0 : i64, scratch_operands = 0 : i64, tpu.core_type = #tpu.core_type<tc>, window_params = [{pipeline_mode = #tpu.pipeline_mode<synchronous>, transform_indices = @transform_0, window_bounds = array<i64: 8, 32>}, {pipeline_mode = #tpu.pipeline_mode<synchronous>, transform_indices = @transform_1, window_bounds = array<i64: 32, 384>}, {pipeline_mode = #tpu.pipeline_mode<synchronous>, transform_indices = @transform_2, window_bounds = array<i64: 8, 128>}]} {
    %c0 = arith.constant 0 : index
    %c0_0 = arith.constant 0 : index
    %0 = vector.load %arg1[%c0, %c0_0] : memref<8x32xf32, #tpu.memory_space<vmem>>, vector<8x32xf32>
    %c0_1 = arith.constant 0 : index
    %c0_2 = arith.constant 0 : index
    %1 = vector.load %arg2[%c0_1, %c0_2] : memref<32x384xf32, #tpu.memory_space<vmem>>, vector<32x384xf32>
    %cst = arith.constant dense<0.000000e+00> : vector<8x384xf32>
    %2 = tpu.matmul %0, %1, %cst {dimension_numbers = #tpu.dot_dimension_numbers<[1], [0], [0], [1], [0, 0, 1, 1], [], []>} : vector<8x32xf32>, vector<32x384xf32>, vector<8x384xf32> -> vector<8x384xf32>
    %3 = vector.extract_strided_slice %2 {offsets = [0, 0], sizes = [8, 128], strides = [1, 1]} : vector<8x384xf32> to vector<8x128xf32>
    %4 = vector.extract_strided_slice %2 {offsets = [0, 128], sizes = [8, 128], strides = [1, 1]} : vector<8x384xf32> to vector<8x128xf32>
    %5 = vector.extract_strided_slice %2 {offsets = [0, 256], sizes = [8, 128], strides = [1, 1]} : vector<8x384xf32> to vector<8x128xf32>
    %cst_3 = arith.constant dense<0.000000e+00> : vector<8x8xf32>
    %6 = tpu.matmul %3, %4, %cst_3 {dimension_numbers = #tpu.dot_dimension_numbers<[1], [1], [0], [0], [0, 0, 1, 0], [], []>} : vector<8x128xf32>, vector<8x128xf32>, vector<8x8xf32> -> vector<8x8xf32>
    %cst_4 = arith.constant dense<0xFF800000> : vector<8xf32>
    %7 = vector.multi_reduction <maximumf>, %6, %cst_4 [1] : vector<8x8xf32> to vector<8xf32>
    %8 = vector.shape_cast %7 : vector<8xf32> to vector<8x1xf32>
    %9 = vector.broadcast %8 : vector<8x1xf32> to vector<8x8xf32>
    %10 = arith.subf %6, %9 : vector<8x8xf32>
    %11 = math.exp %10 : vector<8x8xf32>
    %cst_5 = arith.constant dense<0.000000e+00> : vector<8xf32>
    %12 = vector.multi_reduction <add>, %11, %cst_5 [1] : vector<8x8xf32> to vector<8xf32>
    %13 = vector.shape_cast %12 : vector<8xf32> to vector<8x1xf32>
    %cst_6 = arith.constant dense<0.000000e+00> : vector<8x128xf32>
    %14 = tpu.matmul %11, %5, %cst_6 {dimension_numbers = #tpu.dot_dimension_numbers<[1], [0], [0], [1], [0, 0, 1, 1], [], []>} : vector<8x8xf32>, vector<8x128xf32>, vector<8x128xf32> -> vector<8x128xf32>
    %15 = vector.broadcast %13 : vector<8x1xf32> to vector<8x128xf32>
    %16 = arith.divf %14, %15 : vector<8x128xf32>
    %c0_7 = arith.constant 0 : index
    %c0_8 = arith.constant 0 : index
    %17 = vector.load %arg3[%c0_7, %c0_8] : memref<8x128xf32, #tpu.memory_space<vmem>>, vector<8x128xf32>
    tpu.vector_store %arg3[%c0_7, %c0_8], %16 {strides = array<i32>} : memref<8x128xf32, #tpu.memory_space<vmem>>, vector<8x128xf32>,
    return
  }
  func.func @transform_0(%arg0: i32) -> (i32, i32) {
    %c0_i32 = arith.constant 0 : i32
    %c0_i32_0 = arith.constant 0 : i32
    %c0_i32_1 = arith.constant 0 : i32
    return %c0_i32, %c0_i32_0 : i32, i32
  }
  func.func @transform_1(%arg0: i32) -> (i32, i32) {
    %c0_i32 = arith.constant 0 : i32
    %c0_i32_0 = arith.constant 0 : i32
    %c0_i32_1 = arith.constant 0 : i32
    return %c0_i32, %c0_i32_0 : i32, i32
  }
  func.func @transform_2(%arg0: i32) -> (i32, i32) {
    %c0_i32 = arith.constant 0 : i32
    %c0_i32_0 = arith.constant 0 : i32
    %c0_i32_1 = arith.constant 0 : i32
    return %c0_i32, %c0_i32_0 : i32, i32
  }
}

</mosaic_0001>

<llo_original>
// kernel: tpu_custom_call.1
$region0: #{tpu_custom_call.1}
  #allocation0 [shape = 'u32[]', space=smem, size = 0x4, offset = 0x4, fixed_abs, tag = 'smem constant byte address 0x4 - core index']
  #allocation1 [shape = 'u32[144,128]{1,0:T(1,128)}', space=vmem, size = 0x12000, scoped, tag = 'internal scratch']
  %s0 = inlined_call_operand.hbm [shape: f32[8,32], index: 0, kind: input, shape index: {}]
  %s1 = inlined_call_operand.hbm [shape: f32[32,384], index: 1, kind: input, shape index: {}]
  %s2 = inlined_call_operand.hbm [shape: f32[8,128], index: 2, kind: output, shape index: {}]
  %s3 = sld [smem:[#allocation0]]
  $region26: #{tpu_custom_call.1} parent=0
    _
  %s5 = ssub.s32 1, %s3
  %s6 = scalar_select 0, %s5, %s3
  $region1: #{tpu_custom_call.1} parent=0
    #allocation2 [shape = 'u8[4096]{0}', space=vmem, size = 0x1000, scoped, tag = 'input window, operand 0, single buffered']
    #allocation3 [shape = 's32[1]{0}', space=sflag, size = 0x4, scoped, tag = 'scoped memory for tpu_custom_call.1']
    #allocation4 [shape = 's32[1]{0}', space=sflag, size = 0x4, scoped, tag = 'scoped memory for tpu_custom_call.1']
    #allocation5 [shape = 'u8[49152]{0}', space=vmem, size = 0xc000, scoped, tag = 'input window, operand 1, single buffered']
    #allocation6 [shape = 's32[1]{0}', space=sflag, size = 0x4, scoped, tag = 'scoped memory for tpu_custom_call.1']
    #allocation7 [shape = 'u8[4096]{0}', space=vmem, size = 0x1000, scoped, tag = 'output window, operand 0, single buffered']
    %7 = vsyncpa [#allocation3], 0
    %8 = vsyncpa [#allocation6], 0
    %9 = vsyncpa [#allocation4], 0
    // Predicated region
    $region2: #{tpu_custom_call.1} parent=1 // pred_check
      _
    $region3: #{tpu_custom_call.1} parent=1 // pred_check_branch
      %11 = sbr.rel (0) target = $region5
    $region4: #{tpu_custom_call.1} parent=1 // pred_region
      %s13 = ssub.s32 128, 128
      %14 = vsyncadd [#allocation3], %s13
      %s16 = sshll.u32 [#allocation2], 4
      %s17 = int_to_ptr.vmem [resolvable:$true] %s16
      %19 = dma.hbm_to_vmem [thread:$0]  %s0, 128, %s17, [#allocation3]
    $region5: #{tpu_custom_call.1} parent=1 // pred_fallthru
      _
    // Predicated region
    $region6: #{tpu_custom_call.1} parent=1 // pred_check
      _
    $region7: #{tpu_custom_call.1} parent=1 // pred_check_branch
      %21 = sbr.rel (0) target = $region9
    $region8: #{tpu_custom_call.1} parent=1 // pred_region
      %s23 = ssub.s32 1536, 1536
      %24 = vsyncadd [#allocation6], %s23
      %s25 = sshll.u32 [#allocation5], 4
      %s26 = int_to_ptr.vmem [resolvable:$true] %s25
      %31 = dma.hbm_to_vmem [thread:$0]  %s1, 1536, %s26, [#allocation6], 384, 384, 24
    $region9: #{tpu_custom_call.1} parent=1 // pred_fallthru
      _
    // Predicated region
    $region10: #{tpu_custom_call.1} parent=1 // pred_check
      _
    $region11: #{tpu_custom_call.1} parent=1 // pred_check_branch
      %33 = sbr.rel (0) target = $region13
    $region12: #{tpu_custom_call.1} parent=1 // pred_region
      %34 = dma.done [#allocation3], 128
    $region13: #{tpu_custom_call.1} parent=1 // pred_fallthru
      _
    // Predicated region
    $region14: #{tpu_custom_call.1} parent=1 // pred_check
      _
    $region15: #{tpu_custom_call.1} parent=1 // pred_check_branch
      %36 = sbr.rel (0) target = $region17
    $region16: #{tpu_custom_call.1} parent=1 // pred_region
      %37 = dma.done [#allocation6], 1536
    $region17: #{tpu_custom_call.1} parent=1 // pred_fallthru
      _
    %v38 = vld [vmem:[#allocation2] sm:$0xff]
    %v39 = vld [vmem:[#allocation5] sm:$0xff]
    %v40 = vld [vmem:[#allocation5 + $0x8] sm:$0xff]
    %v41 = vld [vmem:[#allocation5 + $0x10] sm:$0xff]
    %v42 = vld [vmem:[#allocation5 + $0x18] sm:$0xff]
    %v43 = vld [vmem:[#allocation5 + $0x20] sm:$0xff]
    %v44 = vld [vmem:[#allocation5 + $0x28] sm:$0xff]
    %v45 = vld [vmem:[#allocation5 + $0x30] sm:$0xff]
    %v46 = vld [vmem:[#allocation5 + $0x38] sm:$0xff]
    %v47 = vld [vmem:[#allocation5 + $0x40] sm:$0xff]
    %v48 = vld [vmem:[#allocation5 + $0x48] sm:$0xff]
    %v49 = vld [vmem:[#allocation5 + $0x50] sm:$0xff]
    %v50 = vld [vmem:[#allocation5 + $0x58] sm:$0xff]
    %vm51 = vcmask 261120
    %v53 = vsel %vm51, %v38, 0
    %55 = vmatprep.subr.mxu0 %v40
    %56 = vmatpush1.msra.mxu0 %v39
    %57 = vmatprep.subr.mxu0 %v43
    %58 = vmatpush1.msra.mxu0 %v42
    %59 = vmatprep.subr.mxu0 %v46
    %60 = vmatpush1.msra.mxu0 %v45
    %61 = vmatprep.subr.mxu0 %v49
    %62 = vmatpush1.msra.mxu0 %v48
    %63 = vmatprep.subr.mxu0 0.0
    %64 = vmatpush1.msra.mxu0 0.0
    %65 = vmatprep.subr.mxu0 0.0
    %66 = vmatpush1.msra.mxu0 0.0
    %67 = vmatprep.subr.mxu0 0.0
    %68 = vmatpush1.msra.mxu0 0.0
    %69 = vmatprep.subr.mxu0 0.0
    %70 = vmatpush1.msra.mxu0 0.0
    %71 = vmatprep.subr.mxu0 0.0
    %72 = vmatpush1.msra.mxu0 0.0
    %73 = vmatprep.subr.mxu0 0.0
    %74 = vmatpush1.msra.mxu0 0.0
    %75 = vmatprep.subr.mxu0 0.0
    %76 = vmatpush1.msra.mxu0 0.0
    %77 = vmatprep.subr.mxu0 0.0
    %78 = vmatpush1.msra.mxu0 0.0
    %79 = vmatprep.subr.mxu0 0.0
    %80 = vmatpush1.msra.mxu0 0.0
    %81 = vmatprep.subr.mxu0 0.0
    %82 = vmatpush1.msra.mxu0 0.0
    %83 = vmatprep.subr.mxu0 0.0
    %84 = vmatpush1.msra.mxu0 0.0
    %85 = vmatprep.subr.mxu0 0.0
    %86 = vmatpush1.msra.mxu0 0.0
    %87 = vmatprep.subr.mxu0 0.0
    %88 = vmatpush1.msra.mxu0 0.0
    %89 = vmatprep.subr.mxu0 0.0
    %90 = vmatpush1.msra.mxu0 0.0
    %91 = vmatprep.subr.mxu0 0.0
    %92 = vmatpush1.msra.mxu0 0.0
    %93 = vmatprep.subr.mxu0 0.0
    %94 = vmatpush1.msra.mxu0 0.0
    %95 = vmatprep.subr.mxu0 0.0
    %96 = vmatpush1.msra.mxu0 0.0
    %97 = vmatprep.subr.mxu0 0.0
    %98 = vmatpush1.msra.mxu0 0.0
    %99 = vmatprep.subr.mxu0 0.0
    %100 = vmatpush1.msra.mxu0 0.0
    %101 = vmatprep.subr.mxu0 0.0
    %102 = vmatpush1.msra.mxu0 0.0
    %103 = vmatprep.subr.mxu0 0.0
    %104 = vmatpush1.msra.mxu0 0.0
    %105 = vmatprep.subr.mxu0 0.0
    %106 = vmatpush1.msra.mxu0 0.0
    %107 = vmatprep.subr.mxu0 0.0
    %108 = vmatpush1.msra.mxu0 0.0
    %109 = vmatprep.subr.mxu0 0.0
    %110 = vmatpush1.msra.mxu0 0.0
    %111 = vmatprep.subr.mxu0 0.0
    %112 = vmatpush1.msra.mxu0 0.0
    %113 = vmatprep.subr.mxu0 0.0
    %114 = vmatpush1.msra.mxu0 0.0
    %115 = vmatprep.subr.mxu0 0.0
    %116 = vmatpush1.msra.mxu0 0.0
    %117 = vmatprep.subr.mxu0 0.0
    %118 = vmatpush1.msra.mxu0 0.0
    %119 = vmatprep.mubr.f32.mxu0 0.0
    %120 = vmatmul.mubr.f32.gmra.mrb[0].mxu0 %v53
    %v121 = vpop.f32.mrb[0].mxu0
    %v122 = vadd.f32 0.0, %v121
    %v123 = vpop.f32.mrb[0].mxu0
    %v124 = vadd.f32 0.0, %v123
    %125 = vdwg.mxu0
    %126 = vmatprep.subr.mxu0 0.0
    %127 = vmatpush1.msra.mxu0 %v41
    %128 = vmatprep.subr.mxu0 0.0
    %129 = vmatpush1.msra.mxu0 %v44
    %130 = vmatprep.subr.mxu0 0.0
    %131 = vmatpush1.msra.mxu0 %v47
    %132 = vmatprep.subr.mxu0 0.0
    %133 = vmatpush1.msra.mxu0 %v50
    %134 = vmatprep.subr.mxu0 0.0
    %135 = vmatpush1.msra.mxu0 0.0
    %136 = vmatprep.subr.mxu0 0.0
    %137 = vmatpush1.msra.mxu0 0.0
    %138 = vmatprep.subr.mxu0 0.0
    %139 = vmatpush1.msra.mxu0 0.0
    %140 = vmatprep.subr.mxu0 0.0
    %141 = vmatpush1.msra.mxu0 0.0
    %142 = vmatprep.subr.mxu0 0.0
    %143 = vmatpush1.msra.mxu0 0.0
    %144 = vmatprep.subr.mxu0 0.0
    %145 = vmatpush1.msra.mxu0 0.0
    %146 = vmatprep.subr.mxu0 0.0
    %147 = vmatpush1.msra.mxu0 0.0
    %148 = vmatprep.subr.mxu0 0.0
    %149 = vmatpush1.msra.mxu0 0.0
    %150 = vmatprep.subr.mxu0 0.0
    %151 = vmatpush1.msra.mxu0 0.0
    %152 = vmatprep.subr.mxu0 0.0
    %153 = vmatpush1.msra.mxu0 0.0
    %154 = vmatprep.subr.mxu0 0.0
    %155 = vmatpush1.msra.mxu0 0.0
    %156 = vmatprep.subr.mxu0 0.0
    %157 = vmatpush1.msra.mxu0 0.0
    %158 = vmatprep.subr.mxu0 0.0
    %159 = vmatpush1.msra.mxu0 0.0
    %160 = vmatprep.subr.mxu0 0.0
    %161 = vmatpush1.msra.mxu0 0.0
    %162 = vmatprep.subr.mxu0 0.0
    %163 = vmatpush1.msra.mxu0 0.0
    %164 = vmatprep.subr.mxu0 0.0
    %165 = vmatpush1.msra.mxu0 0.0
    %166 = vmatprep.subr.mxu0 0.0
    %167 = vmatpush1.msra.mxu0 0.0
    %168 = vmatprep.subr.mxu0 0.0
    %169 = vmatpush1.msra.mxu0 0.0
    %170 = vmatprep.subr.mxu0 0.0
    %171 = vmatpush1.msra.mxu0 0.0
    %172 = vmatprep.subr.mxu0 0.0
    %173 = vmatpush1.msra.mxu0 0.0
    %174 = vmatprep.subr.mxu0 0.0
    %175 = vmatpush1.msra.mxu0 0.0
    %176 = vmatprep.subr.mxu0 0.0
    %177 = vmatpush1.msra.mxu0 0.0
    %178 = vmatprep.subr.mxu0 0.0
    %179 = vmatpush1.msra.mxu0 0.0
    %180 = vmatprep.subr.mxu0 0.0
    %181 = vmatpush1.msra.mxu0 0.0
    %182 = vmatprep.subr.mxu0 0.0
    %183 = vmatpush1.msra.mxu0 0.0
    %184 = vmatprep.subr.mxu0 0.0
    %185 = vmatpush1.msra.mxu0 0.0
    %186 = vmatprep.subr.mxu0 0.0
    %187 = vmatpush1.msra.mxu0 0.0
    %188 = vmatprep.subr.mxu0 0.0
    %189 = vmatpush1.msra.mxu0 0.0
    %190 = vmatprep.mubr.f32.mxu0 0.0
    %191 = vmatmul.mubr.f32.gmra.mrb[0].mxu0 %v53
    %v192 = vpop.f32.mrb[0].mxu0
    %v193 = vadd.f32 0.0, %v192
    %v194 = vpop.f32.mrb[0].mxu0
    %195 = vdwg.mxu0
    %196 = vmatprep.subr.mxu0 0.0
    %197 = vmatpush1.xpose.msra.mxu0 %v124
    %198 = vmatprep.subr.mxu0 0.0
    %199 = vmatpush1.xpose.msra.mxu0 0.0
    %200 = vmatprep.subr.mxu0 0.0
    %201 = vmatpush1.xpose.msra.mxu0 0.0
    %202 = vmatprep.subr.mxu0 0.0
    %203 = vmatpush1.xpose.msra.mxu0 0.0
    %204 = vmatprep.subr.mxu0 0.0
    %205 = vmatpush1.xpose.msra.mxu0 0.0
    %206 = vmatprep.subr.mxu0 0.0
    %207 = vmatpush1.xpose.msra.mxu0 0.0
    %208 = vmatprep.subr.mxu0 0.0
    %209 = vmatpush1.xpose.msra.mxu0 0.0
    %210 = vmatprep.subr.mxu0 0.0
    %211 = vmatpush1.xpose.msra.mxu0 0.0
    %212 = vmatprep.subr.mxu0 0.0
    %213 = vmatpush1.xpose.msra.mxu0 0.0
    %214 = vmatprep.subr.mxu0 0.0
    %215 = vmatpush1.xpose.msra.mxu0 0.0
    %216 = vmatprep.subr.mxu0 0.0
    %217 = vmatpush1.xpose.msra.mxu0 0.0
    %218 = vmatprep.subr.mxu0 0.0
    %219 = vmatpush1.xpose.msra.mxu0 0.0
    %220 = vmatprep.subr.mxu0 0.0
    %221 = vmatpush1.xpose.msra.mxu0 0.0
    %222 = vmatprep.subr.mxu0 0.0
    %223 = vmatpush1.xpose.msra.mxu0 0.0
    %224 = vmatprep.subr.mxu0 0.0
    %225 = vmatpush1.xpose.msra.mxu0 0.0
    %226 = vmatprep.subr.mxu0 0.0
    %227 = vmatpush1.xpose.msra.mxu0 0.0
    %228 = vmatprep.subr.mxu0 0.0
    %229 = vmatpush1.xpose.msra.mxu0 0.0
    %230 = vmatprep.subr.mxu0 0.0
    %231 = vmatpush1.xpose.msra.mxu0 0.0
    %232 = vmatprep.subr.mxu0 0.0
    %233 = vmatpush1.xpose.msra.mxu0 0.0
    %234 = vmatprep.subr.mxu0 0.0
    %235 = vmatpush1.xpose.msra.mxu0 0.0
    %236 = vmatprep.subr.mxu0 0.0
    %237 = vmatpush1.xpose.msra.mxu0 0.0
    %238 = vmatprep.subr.mxu0 0.0
    %239 = vmatpush1.xpose.msra.mxu0 0.0
    %240 = vmatprep.subr.mxu0 0.0
    %241 = vmatpush1.xpose.msra.mxu0 0.0
    %242 = vmatprep.subr.mxu0 0.0
    %243 = vmatpush1.xpose.msra.mxu0 0.0
    %244 = vmatprep.subr.mxu0 0.0
    %245 = vmatpush1.xpose.msra.mxu0 0.0
    %246 = vmatprep.subr.mxu0 0.0
    %247 = vmatpush1.xpose.msra.mxu0 0.0
    %248 = vmatprep.subr.mxu0 0.0
    %249 = vmatpush1.xpose.msra.mxu0 0.0
    %250 = vmatprep.subr.mxu0 0.0
    %251 = vmatpush1.xpose.msra.mxu0 0.0
    %252 = vmatprep.subr.mxu0 0.0
    %253 = vmatpush1.xpose.msra.mxu0 0.0
    %254 = vmatprep.subr.mxu0 0.0
    %255 = vmatpush1.xpose.msra.mxu0 0.0
    %256 = vmatprep.subr.mxu0 0.0
    %257 = vmatpush1.xpose.msra.mxu0 0.0
    %258 = vmatprep.subr.mxu0 0.0
    %259 = vmatpush1.xpose.msra.mxu0 0.0
    %260 = vmatprep.mubr.f32.mxu0 0.0
    %261 = vmatmul.mubr.f32.gmra.mrb[0].mxu0 %v122
    %v262 = vpop.f32.mrb[0].mxu0
    %v263 = vadd.f32 0.0, %v262
    %v264 = vpop.f32.mrb[0].mxu0
    %265 = vdwg.mxu0
    %vm266 = vcmask 64512
    %v267 = vsel %vm266, %v263, -inf
    %268 = vmax.xlane.f32.xlu0 %v267
    %v269 = vpop.xlane.xlu0 %268
    %v270 = vsub.f32 %v263, %v269
    %v271 = vmul.f32 %v270, 1.442695
    %v272 = vpow.pop %v271
    %v273 = vsel %vm266, %v272, 0.0
    %274 = vadd.xlane.f32.xlu0 %v273
    %v275 = vpop.xlane.xlu0 %274
    %v277 = vsel %vm266, %v272, 0
    %279 = vmatprep.subr.mxu0 0.0
    %280 = vmatpush1.msra.mxu0 %v193
    %281 = vmatprep.subr.mxu0 0.0
    %282 = vmatpush1.msra.mxu0 0.0
    %283 = vmatprep.subr.mxu0 0.0
    %284 = vmatpush1.msra.mxu0 0.0
    %285 = vmatprep.subr.mxu0 0.0
    %286 = vmatpush1.msra.mxu0 0.0
    %287 = vmatprep.subr.mxu0 0.0
    %288 = vmatpush1.msra.mxu0 0.0
    %289 = vmatprep.subr.mxu0 0.0
    %290 = vmatpush1.msra.mxu0 0.0
    %291 = vmatprep.subr.mxu0 0.0
    %292 = vmatpush1.msra.mxu0 0.0
    %293 = vmatprep.subr.mxu0 0.0
    %294 = vmatpush1.msra.mxu0 0.0
    %295 = vmatprep.subr.mxu0 0.0
    %296 = vmatpush1.msra.mxu0 0.0
    %297 = vmatprep.subr.mxu0 0.0
    %298 = vmatpush1.msra.mxu0 0.0
    %299 = vmatprep.subr.mxu0 0.0
    %300 = vmatpush1.msra.mxu0 0.0
    %301 = vmatprep.subr.mxu0 0.0
    %302 = vmatpush1.msra.mxu0 0.0
    %303 = vmatprep.subr.mxu0 0.0
    %304 = vmatpush1.msra.mxu0 0.0
    %305 = vmatprep.subr.mxu0 0.0
    %306 = vmatpush1.msra.mxu0 0.0
    %307 = vmatprep.subr.mxu0 0.0
    %308 = vmatpush1.msra.mxu0 0.0
    %309 = vmatprep.subr.mxu0 0.0
    %310 = vmatpush1.msra.mxu0 0.0
    %311 = vmatprep.subr.mxu0 0.0
    %312 = vmatpush1.msra.mxu0 0.0
    %313 = vmatprep.subr.mxu0 0.0
    %314 = vmatpush1.msra.mxu0 0.0
    %315 = vmatprep.subr.mxu0 0.0
    %316 = vmatpush1.msra.mxu0 0.0
    %317 = vmatprep.subr.mxu0 0.0
    %318 = vmatpush1.msra.mxu0 0.0
    %319 = vmatprep.subr.mxu0 0.0
    %320 = vmatpush1.msra.mxu0 0.0
    %321 = vmatprep.subr.mxu0 0.0
    %322 = vmatpush1.msra.mxu0 0.0
    %323 = vmatprep.subr.mxu0 0.0
    %324 = vmatpush1.msra.mxu0 0.0
    %325 = vmatprep.subr.mxu0 0.0
    %326 = vmatpush1.msra.mxu0 0.0
    %327 = vmatprep.subr.mxu0 0.0
    %328 = vmatpush1.msra.mxu0 0.0
    %329 = vmatprep.subr.mxu0 0.0
    %330 = vmatpush1.msra.mxu0 0.0
    %331 = vmatprep.subr.mxu0 0.0
    %332 = vmatpush1.msra.mxu0 0.0
    %333 = vmatprep.subr.mxu0 0.0
    %334 = vmatpush1.msra.mxu0 0.0
    %335 = vmatprep.subr.mxu0 0.0
    %336 = vmatpush1.msra.mxu0 0.0
    %337 = vmatprep.subr.mxu0 0.0
    %338 = vmatpush1.msra.mxu0 0.0
    %339 = vmatprep.subr.mxu0 0.0
    %340 = vmatpush1.msra.mxu0 0.0
    %341 = vmatprep.subr.mxu0 0.0
    %342 = vmatpush1.msra.mxu0 0.0
    %343 = vmatprep.mubr.f32.mxu0 0.0
    %344 = vmatmul.mubr.f32.gmra.mrb[0].mxu0 %v277
    %v345 = vpop.f32.mrb[0].mxu0
    %v346 = vadd.f32 0.0, %v345
    %v347 = vpop.f32.mrb[0].mxu0
    %348 = vdwg.mxu0
    %v349 = vrcp.pop %v275
    %v350 = vmul.f32 %v346, %v349
    %351 = vst [vmem:[#allocation7] sm:$0xff] %v350
    // Predicated region
    $region18: #{tpu_custom_call.1} parent=1 // pred_check
      _
    $region19: #{tpu_custom_call.1} parent=1 // pred_check_branch
      %353 = sbr.rel (0) target = $region21
    $region20: #{tpu_custom_call.1} parent=1 // pred_region
      %s355 = ssub.s32 128, 128
      %356 = vsyncadd [#allocation4], %s355
      %s358 = sshll.u32 [#allocation7], 4
      %s359 = int_to_ptr.vmem [resolvable:$true] %s358
      %361 = dma.vmem_to_hbm [thread:$0]  %s359, 128, %s2, [#allocation4]
    $region21: #{tpu_custom_call.1} parent=1 // pred_fallthru
      _
    // Predicated region
    $region22: #{tpu_custom_call.1} parent=1 // pred_check
      _
    $region23: #{tpu_custom_call.1} parent=1 // pred_check_branch
      %363 = sbr.rel (0) target = $region25
    $region24: #{tpu_custom_call.1} parent=1 // pred_region
      %364 = dma.done [#allocation4], 128
    $region25: #{tpu_custom_call.1} parent=1 // pred_fallthru
      _
    %365 = vsyncpa [#allocation3], 1
    %366 = vsyncpa [#allocation6], 1
    %367 = vsyncpa [#allocation4], 1

</llo_original>
